<compile_context>
chip_gen: v5e
topology: v5e:2x2
jax: 0.10.0
libtpu: 0.0.40
codegen_flags: <defaults>
</compile_context>

<pallas_src>
from functools import partial
from typing import NamedTuple

import jax
import jax.numpy as jnp
from jax import lax
from jax.experimental import pallas as pl
from jax.experimental.pallas import tpu as pltpu

_MIB = 1024 * 1024


def _round_up(x, m):
    return (x + m - 1) // m * m


def _cdiv(a, b):
    return -(-a // b)


def _vmem_capacity_bytes():
    """Physical VMEM per TensorCore (generation-aware, with safe fallbacks)."""
    try:
        info = pltpu.get_tpu_info()
        cap = getattr(info, "vmem_capacity_bytes", None)
        if cap:
            return int(cap)
    except Exception:
        pass
    try:
        kind = jax.devices()[0].device_kind.lower()
    except Exception:
        kind = ""
    if "7" in kind:           # v7x: 64 MiB per TensorCore
        return 64 * _MIB
    return 128 * _MIB         # v4/v5e/v5p/v6e: 128 MiB


class _Tiling(NamedTuple):
    bc_pad: int
    hw_pad: int
    tm: int
    tk: int
    nm: int
    nk: int


def _choose_tiles(bc, hw, dtype, k_tile_cap=None):
    isz = jnp.dtype(dtype).itemsize
    pack = 8 * (4 // isz)                 # sublane packing: f32 8, bf16 16, i8 32
    bc_pad = _round_up(bc, pack)

    # M (gram-row) tiling: single block for moderate bc; ~256-row blocks once
    # bc is large (smaller accumulator + parallel M axis for megacore).
    if bc_pad <= 512:
        tm, nm = bc_pad, 1
    else:
        nm = _cdiv(bc_pad, 256)
        tm = _round_up(_cdiv(bc_pad, nm), pack)
        bc_pad = nm * tm

    # K tiling: generation-aware VMEM budget for the double-buffered feature
    # tiles.  hw is padded only to a multiple of 128; the K tile is balanced
    # across nk steps so padding never approaches a full tile.
    cap = _vmem_capacity_bytes()
    feat_budget = (cap * 3) // 8          # ~48 MiB on 128-MiB parts, ~24 MiB on v7x
    per_col = 2 * (bc_pad if nm == 1 else tm + bc_pad) * isz
    hw128 = _round_up(hw, 128)
    tk_max = max(128, (feat_budget // per_col) // 128 * 128)
    if k_tile_cap is not None:
        tk_max = min(tk_max, max(128, (k_tile_cap // 128) * 128))
    tk_max = min(tk_max, hw128)
    nk = _cdiv(hw128, tk_max)
    tk = _round_up(_cdiv(hw128, nk), 128)
    hw_pad = nk * tk
    return _Tiling(bc_pad, hw_pad, tm, tk, nm, nk)


def _prep_features(x, k_tile_cap=None):
    """(b,c,h,w) -> (bc_pad, hw_pad) feature matrix (zero-padded only if needed).

    Zero padding of either axis does not change the unpadded gram entries."""
    b, c, h, w = x.shape
    bc, hw = b * c, h * w
    feats = x.reshape(bc, hw)
    t = _choose_tiles(bc, hw, feats.dtype, k_tile_cap)
    if (t.bc_pad, t.hw_pad) != (bc, hw):
        # TODO(synk): mask the ragged last K tile in-kernel to avoid this
        # extra HBM read+write pass for non-aligned feature maps.
        feats = jnp.pad(feats, ((0, t.bc_pad - bc), (0, t.hw_pad - hw)))
    return feats, t


# ------------------------------ kernels ------------------------------------

def _gram_step(lhs_ref, rhs_ref, acc_ref, mxu_dtype):
    """One K-step: acc += lhs @ rhs^T (contract axis 1 of both; no transpose)."""
    @pl.when(pl.program_id(1) == 0)
    def _():
        acc_ref[...] = jnp.zeros_like(acc_ref)

    a = lhs_ref[...]
    b = rhs_ref[...]
    if mxu_dtype is not None and a.dtype != mxu_dtype:
        a = a.astype(mxu_dtype)
        b = b.astype(mxu_dtype)
    acc_ref[...] += lax.dot_general(
        a, b,
        dimension_numbers=(((1,), (1,)), ((), ())),
        preferred_element_type=jnp.float32,
    )


def _gram_epilogue(acc_ref, g_ref, inv_norm):
    @pl.when(pl.program_id(1) == pl.num_programs(1) - 1)
    def _():
        g_ref[...] = acc_ref[...] * inv_norm


def _gram_kernel_shared(feat_ref, g_ref, acc_ref, *, inv_norm, mxu_dtype):
    _gram_step(feat_ref, feat_ref, acc_ref, mxu_dtype)
    _gram_epilogue(acc_ref, g_ref, inv_norm)


def _gram_kernel_split(lhs_ref, rhs_ref, g_ref, acc_ref, *, inv_norm, mxu_dtype):
    _gram_step(lhs_ref, rhs_ref, acc_ref, mxu_dtype)
    _gram_epilogue(acc_ref, g_ref, inv_norm)


def _loss_epilogue(acc_ref, target_ref, loss_ref, inv_norm, inv_count):
    @pl.when((pl.program_id(0) == 0) & (pl.program_id(1) == 0))
    def _():
        loss_ref[0, 0] = jnp.float32(0.0)

    @pl.when(pl.program_id(1) == pl.num_programs(1) - 1)
    def _():
        # Padded rows/cols are zero in both grams, so they contribute 0.
        diff = acc_ref[...] * inv_norm - target_ref[...]
        loss_ref[0, 0] += jnp.sum(diff * diff) * inv_count


def _loss_kernel_shared(feat_ref, target_ref, loss_ref, acc_ref, *,
                        inv_norm, inv_count, mxu_dtype):
    _gram_step(feat_ref, feat_ref, acc_ref, mxu_dtype)
    _loss_epilogue(acc_ref, target_ref, loss_ref, inv_norm, inv_count)


def _loss_kernel_split(lhs_ref, rhs_ref, target_ref, loss_ref, acc_ref, *,
                       inv_norm, inv_count, mxu_dtype):
    _gram_step(lhs_ref, rhs_ref, acc_ref, mxu_dtype)
    _loss_epilogue(acc_ref, target_ref, loss_ref, inv_norm, inv_count)


# ------------------------------ wrappers ------------------------------------

def _feature_specs(t, shared):
    if shared:
        return [pl.BlockSpec((t.bc_pad, t.tk), lambda m, k: (0, k))]
    return [pl.BlockSpec((t.tm, t.tk), lambda m, k: (m, k)),
            pl.BlockSpec((t.bc_pad, t.tk), lambda m, k: (0, k))]


def _feature_vmem_bytes(t, shared, isz):
    width = t.bc_pad if shared else (t.tm + t.bc_pad)
    return 2 * width * t.tk * isz          # double-buffered feature tiles


def _vmem_limit(footprint_bytes):
    return int(min(_vmem_capacity_bytes(), footprint_bytes + 8 * _MIB))


def gram_matrix(x, *, mxu_dtype=None, k_tile_cap=None):
    """Pallas equivalent of the PyTorch gram_matrix helper. x: (b, c, h, w)."""
    b, c, h, w = x.shape
    bc = b * c
    feats, t = _prep_features(x, k_tile_cap)
    isz = feats.dtype.itemsize
    inv_norm = 1.0 / float(b * c * h * w)
    shared = t.nm == 1

    kern = partial(_gram_kernel_shared if shared else _gram_kernel_split,
                   inv_norm=inv_norm, mxu_dtype=mxu_dtype)
    operands = (feats,) if shared else (feats, feats)
    read_bytes = (1 if shared else 1 + t.nm) * t.bc_pad * t.hw_pad * isz
    footprint = (_feature_vmem_bytes(t, shared, isz)
                 + 2 * t.tm * t.bc_pad * 4      # double-buffered output block
                 + t.tm * t.bc_pad * 4)         # accumulator scratch

    g_pad = pl.pallas_call(
        kern,
        out_shape=jax.ShapeDtypeStruct((t.bc_pad, t.bc_pad), jnp.float32),
        grid_spec=pltpu.PrefetchScalarGridSpec(
            num_scalar_prefetch=0,
            grid=(t.nm, t.nk),
            in_specs=_feature_specs(t, shared),
            out_specs=pl.BlockSpec((t.tm, t.bc_pad), lambda m, k: (m, 0)),
            scratch_shapes=[pltpu.VMEM((t.tm, t.bc_pad), jnp.float32)],
        ),
        compiler_params=pltpu.CompilerParams(
            dimension_semantics=("parallel", "arbitrary"),
            vmem_limit_bytes=_vmem_limit(footprint)),
        cost_estimate=pl.CostEstimate(
            flops=2 * t.bc_pad * t.bc_pad * t.hw_pad,
            transcendentals=0,
            bytes_accessed=read_bytes + t.bc_pad * t.bc_pad * 4),
    )(*operands)
    return g_pad[:bc, :bc]


def style_loss_forward(x, target_gram, *, mxu_dtype=None, k_tile_cap=None):
    """Returns (x, mse(gram(x), target_gram)) — same semantics as StyleLoss.forward."""
    b, c, h, w = x.shape
    bc = b * c
    feats, t = _prep_features(x, k_tile_cap)
    isz = feats.dtype.itemsize
    inv_norm = 1.0 / float(b * c * h * w)
    inv_count = 1.0 / float(bc * bc)
    shared = t.nm == 1

    tgt = target_gram.astype(jnp.float32)
    if t.bc_pad != bc:
        tgt = jnp.pad(tgt, ((0, t.bc_pad - bc), (0, t.bc_pad - bc)))

    kern = partial(_loss_kernel_shared if shared else _loss_kernel_split,
                   inv_norm=inv_norm, inv_count=inv_count, mxu_dtype=mxu_dtype)
    operands = (feats, tgt) if shared else (feats, feats, tgt)
    in_specs = _feature_specs(t, shared) + [
        # Resident target gram row-block (constant K index => fetched once per M).
        pl.BlockSpec((t.tm, t.bc_pad), lambda m, k: (m, 0)),
    ]
    read_bytes = ((1 if shared else 1 + t.nm) * t.bc_pad * t.hw_pad * isz
                  + t.bc_pad * t.bc_pad * 4)
    footprint = (_feature_vmem_bytes(t, shared, isz)
                 + 2 * t.tm * t.bc_pad * 4      # double-buffered target block
                 + t.tm * t.bc_pad * 4)         # accumulator scratch

    loss = pl.pallas_call(
        kern,
        out_shape=jax.ShapeDtypeStruct((1, 1), jnp.float32),
        grid_spec=pltpu.PrefetchScalarGridSpec(
            num_scalar_prefetch=0,
            grid=(t.nm, t.nk),
            in_specs=in_specs,
            out_specs=pl.BlockSpec(memory_space=pltpu.MemorySpace.SMEM),
            scratch_shapes=[pltpu.VMEM((t.tm, t.bc_pad), jnp.float32)],
        ),
        # M axis kept "arbitrary": the scalar SMEM accumulation must be
        # sequential.  TODO(synk): per-M-block partial losses for megacore.
        compiler_params=pltpu.CompilerParams(
            dimension_semantics=("arbitrary", "arbitrary"),
            vmem_limit_bytes=_vmem_limit(footprint)),
        cost_estimate=pl.CostEstimate(
            flops=2 * t.bc_pad * t.bc_pad * t.hw_pad + 3 * t.bc_pad * t.bc_pad,
            transcendentals=0,
            bytes_accessed=read_bytes + 4),
    )(*operands)
    # forward() returns its input unchanged; the loss is a side value.
    return x, loss[0, 0]


class StyleLoss:
    """JAX/Pallas port of the PyTorch StyleLoss module."""

    def __init__(self, target_feature):
        # target gram is a constant (detach() in PyTorch); computed once here.
        self.target = gram_matrix(target_feature)
        self.loss = None

    def __call__(self, x):
        out, self.loss = style_loss_forward(x, self.target)
        return out


if __name__ == "__main__":
    key = jax.random.PRNGKey(0)
    k1, k2, k3, k4, k5, k6 = jax.random.split(key, 6)

    def ref_gram(t):
        b, c, h, w = t.shape
        f = t.reshape(b * c, h * w).astype(jnp.float32)
        return (f @ f.T) / (b * c * h * w)

    def ref_loss(xx, tfeat):
        return jnp.mean((ref_gram(xx) - ref_gram(tfeat)) ** 2)

    # --- Test 1: aligned f32 feature map (no padding path), exact check. ---
    target_feature = jax.random.normal(k1, (2, 4, 16, 16), dtype=jnp.float32)
    x = jax.random.normal(k2, (2, 4, 16, 16), dtype=jnp.float32)
    module = StyleLoss(target_feature)
    out = module(x)
    jax.block_until_ready(out)
    jax.block_until_ready(module.loss)
    assert out.shape == x.shape and out.dtype == x.dtype
    assert jnp.allclose(out, x)
    assert jnp.allclose(module.target, ref_gram(target_feature), rtol=1e-5, atol=1e-6)
    assert jnp.allclose(module.loss, ref_loss(x, target_feature), rtol=1e-5, atol=1e-6)

    # --- Test 2: ragged shapes + forced multi-K-step accumulation (nk >= 3). ---
    tfeat2 = jax.random.normal(k3, (2, 5, 17, 23), dtype=jnp.float32)
    x2 = jax.random.normal(k4, (2, 5, 17, 23), dtype=jnp.float32)
    g2 = gram_matrix(x2, k_tile_cap=128)
    tgt2 = gram_matrix(tfeat2, k_tile_cap=128)
    _, loss2 = style_loss_forward(x2, tgt2, k_tile_cap=128)
    jax.block_until_ready(loss2)
    assert jnp.allclose(g2, ref_gram(x2), rtol=1e-5, atol=1e-6)
    assert jnp.allclose(loss2, ref_loss(x2, tfeat2), rtol=1e-5, atol=1e-6)

    # --- Test 3: bf16 features (packed sublanes + native bf16 MXU path). ---
    xb = x.astype(jnp.bfloat16)
    tb = target_feature.astype(jnp.bfloat16)
    gb = gram_matrix(xb)
    _, lossb = style_loss_forward(xb, gram_matrix(tb))
    jax.block_until_ready(lossb)
    assert jnp.allclose(gb, ref_gram(xb), rtol=1e-4, atol=1e-5)
    assert jnp.allclose(lossb, ref_loss(xb, tb), rtol=1e-4, atol=1e-5)

    # --- Test 4: large channel count -> split LHS/RHS path with M tiling. ---
    tfeat3 = jax.random.normal(k5, (1, 520, 8, 8), dtype=jnp.float32)
    x3 = jax.random.normal(k6, (1, 520, 8, 8), dtype=jnp.float32)
    g3 = gram_matrix(x3)
    _, loss3 = style_loss_forward(x3, gram_matrix(tfeat3))
    jax.block_until_ready(loss3)
    assert jnp.allclose(g3, ref_gram(x3), rtol=1e-5, atol=1e-6)
    assert jnp.allclose(loss3, ref_loss(x3, tfeat3), rtol=1e-5, atol=1e-6)

    print("KERNEL_OK")
</pallas_src>

<mosaic_0001>
module attributes {stable_mosaic.version = 11 : i64} {
  func.func @_gram_kernel_shared(%arg0: i32, %arg1: i32, %arg2: memref<8x256xf32, #tpu.memory_space<vmem>>, %arg3: memref<8x8xf32, #tpu.memory_space<vmem>>, %arg4: memref<8x8xf32, #tpu.memory_space<vmem>>) attributes {dimension_semantics = [#tpu.dimension_semantics<parallel>, #tpu.dimension_semantics<arbitrary>], iteration_bounds = array<i64: 1, 1>, scalar_prefetch = 0 : i64, scratch_operands = 1 : i64, tpu.core_type = #tpu.core_type<tc>, window_params = [{transform_indices = @transform_0, window_bounds = array<i64: 8, 256>}, {transform_indices = @transform_1, window_bounds = array<i64: 8, 8>}]} {
    %c0_i32 = arith.constant 0 : i32
    %0 = arith.cmpi eq, %arg1, %c0_i32 : i32
    %1 = arith.extui %0 : i1 to i32
    %c0_i32_0 = arith.constant 0 : i32
    %2 = arith.cmpi ne, %1, %c0_i32_0 : i32
    scf.if %2 {
      %cst_10 = arith.constant 0.000000e+00 : f32
      %12 = vector.broadcast %cst_10 : f32 to vector<8x8xf32>
      %c0_11 = arith.constant 0 : index
      %c0_12 = arith.constant 0 : index
      %13 = vector.load %arg4[%c0_11, %c0_12] : memref<8x8xf32, #tpu.memory_space<vmem>>, vector<8x8xf32>
      tpu.vector_store %arg4[%c0_11, %c0_12], %12 {strides = array<i32>} : memref<8x8xf32, #tpu.memory_space<vmem>>, vector<8x8xf32>,
    } else {
    }
    %c0 = arith.constant 0 : index
    %c0_1 = arith.constant 0 : index
    %3 = vector.load %arg2[%c0, %c0_1] : memref<8x256xf32, #tpu.memory_space<vmem>>, vector<8x256xf32>
    %c0_2 = arith.constant 0 : index
    %c0_3 = arith.constant 0 : index
    %4 = vector.load %arg2[%c0_2, %c0_3] : memref<8x256xf32, #tpu.memory_space<vmem>>, vector<8x256xf32>
    %c0_4 = arith.constant 0 : index
    %c0_5 = arith.constant 0 : index
    %5 = vector.load %arg4[%c0_4, %c0_5] : memref<8x8xf32, #tpu.memory_space<vmem>>, vector<8x8xf32>
    %cst = arith.constant dense<0.000000e+00> : vector<8x8xf32>
    %6 = tpu.matmul %3, %4, %cst {dimension_numbers = #tpu.dot_dimension_numbers<[1], [1], [0], [0], [0, 0, 1, 0], [], []>} : vector<8x256xf32>, vector<8x256xf32>, vector<8x8xf32> -> vector<8x8xf32>
    %7 = arith.addf %5, %6 : vector<8x8xf32>
    %c0_6 = arith.constant 0 : index
    %c0_7 = arith.constant 0 : index
    %8 = vector.load %arg4[%c0_6, %c0_7] : memref<8x8xf32, #tpu.memory_space<vmem>>, vector<8x8xf32>
    tpu.vector_store %arg4[%c0_6, %c0_7], %7 {strides = array<i32>} : memref<8x8xf32, #tpu.memory_space<vmem>>, vector<8x8xf32>,
    %c0_i32_8 = arith.constant 0 : i32
    %9 = arith.cmpi eq, %arg1, %c0_i32_8 : i32
    %10 = arith.extui %9 : i1 to i32
    %c0_i32_9 = arith.constant 0 : i32
    %11 = arith.cmpi ne, %10, %c0_i32_9 : i32
    scf.if %11 {
      %c0_10 = arith.constant 0 : index
      %c0_11 = arith.constant 0 : index
      %12 = vector.load %arg4[%c0_10, %c0_11] : memref<8x8xf32, #tpu.memory_space<vmem>>, vector<8x8xf32>
      %cst_12 = arith.constant 4.8828125E-4 : f32
      %13 = vector.broadcast %cst_12 : f32 to vector<8x8xf32>
      %14 = arith.mulf %12, %13 : vector<8x8xf32>
      %c0_13 = arith.constant 0 : index
      %c0_14 = arith.constant 0 : index
      %15 = vector.load %arg3[%c0_13, %c0_14] : memref<8x8xf32, #tpu.memory_space<vmem>>, vector<8x8xf32>
      tpu.vector_store %arg3[%c0_13, %c0_14], %14 {strides = array<i32>} : memref<8x8xf32, #tpu.memory_space<vmem>>, vector<8x8xf32>,
    } else {
    }
    return
  }
  func.func @transform_0(%arg0: i32, %arg1: i32) -> (i32, i32) {
    %c0_i32 = arith.constant 0 : i32
    %c0_i32_0 = arith.constant 0 : i32
    return %c0_i32, %arg1 : i32, i32
  }
  func.func @transform_1(%arg0: i32, %arg1: i32) -> (i32, i32) {
    %c0_i32 = arith.constant 0 : i32
    %c0_i32_0 = arith.constant 0 : i32
    return %arg0, %c0_i32 : i32, i32
  }
}

</mosaic_0001>

<llo_original>
// kernel: tpu_custom_call.1
$region0: #{tpu_custom_call.1}
  #allocation0 [shape = 'u32[]', space=smem, size = 0x4, offset = 0x4, fixed_abs, tag = 'smem constant byte address 0x4 - core index']
  #allocation1 [shape = 'u32[72,128]{1,0:T(1,128)}', space=vmem, size = 0x9000, scoped, tag = 'internal scratch']
  #allocation2 [shape = 'f32[8,8]{1,0:T(8,128)}', space=vmem, size = 0x1000, scoped, tag = 'scratch operand']
  %s0 = inlined_call_operand.hbm [shape: f32[8,256], index: 0, kind: input, shape index: {}]
  %s1 = inlined_call_operand.hbm [shape: f32[8,8], index: 1, kind: output, shape index: {}]
  %s2 = sld [smem:[#allocation0]]
  $region26: #{tpu_custom_call.1} parent=0
    _
  %s4 = ssub.s32 1, %s2
  %s5 = scalar_select 0, %s4, %s2
  $region1: #{tpu_custom_call.1} parent=0
    #allocation3 [shape = 'u8[8192]{0}', space=vmem, size = 0x2000, scoped, tag = 'input window, operand 0, single buffered']
    #allocation4 [shape = 's32[1]{0}', space=sflag, size = 0x4, scoped, tag = 'scoped memory for tpu_custom_call.1']
    #allocation5 [shape = 's32[1]{0}', space=sflag, size = 0x4, scoped, tag = 'scoped memory for tpu_custom_call.1']
    #allocation6 [shape = 'u8[4096]{0}', space=vmem, size = 0x1000, scoped, tag = 'output window, operand 0, single buffered']
    %6 = vsyncpa [#allocation4], 0
    %7 = vsyncpa [#allocation5], 0
    // Predicated region
    $region2: #{tpu_custom_call.1} parent=1 // pred_check
      _
    $region3: #{tpu_custom_call.1} parent=1 // pred_check_branch
      %9 = sbr.rel (0) target = $region5
    $region4: #{tpu_custom_call.1} parent=1 // pred_region
      %11 = vsyncadd [#allocation4], 0
      %s13 = sshll.u32 %s0, 4
      %s14 = int_to_ptr.hbm [resolvable:$true] %s13
      %s15 = sshll.u32 [#allocation3], 4
      %s16 = int_to_ptr.vmem [resolvable:$true] %s15
      %18 = dma.hbm_to_vmem [thread:$0]  %s14, 256, %s16, [#allocation4]
    $region5: #{tpu_custom_call.1} parent=1 // pred_fallthru
      _
    // Predicated region
    $region6: #{tpu_custom_call.1} parent=1 // pred_check
      _
    $region7: #{tpu_custom_call.1} parent=1 // pred_check_branch
      %20 = sbr.rel (0) target = $region9
    $region8: #{tpu_custom_call.1} parent=1 // pred_region
      %22 = dma.done [#allocation4], 256
    $region9: #{tpu_custom_call.1} parent=1 // pred_fallthru
      _
    %p23 = scmp.eq.s32.totalorder 0, 0
    // Predicated region
    $region10: #{tpu_custom_call.1} parent=1 // pred_check
      %p24 = pneg %p23
    $region11: #{tpu_custom_call.1} parent=1 // pred_check_branch
      %26 = sbr.rel (%p24) target = $region13
    $region12: #{tpu_custom_call.1} parent=1 // pred_region
      %vm27 = vcmask 64512
      %28 = vst.msk [vmem:[#allocation2] sm:$0xff] %vm27, 0.0
    $region13: #{tpu_custom_call.1} parent=1 // pred_fallthru
      _
    %v29 = vld [vmem:[#allocation3] sm:$0xff]
    %v30 = vld [vmem:[#allocation3 + $0x8] sm:$0xff]
    %v31 = vld [vmem:[#allocation2] sm:$0xff]
    %32 = vmatpush.xpose.msra.mxu0 0.0
    %33 = vmatpush.xpose.msra.mxu0 0.0
    %34 = vmatpush.xpose.msra.mxu0 0.0
    %35 = vmatpush.xpose.msra.mxu0 0.0
    %36 = vmatpush.xpose.msra.mxu0 0.0
    %37 = vmatpush.xpose.msra.mxu0 0.0
    %38 = vmatpush.xpose.msra.mxu0 0.0
    %39 = vmatpush.xpose.msra.mxu0 0.0
    %40 = vmatpush.xpose.msra.mxu0 0.0
    %41 = vmatpush.xpose.msra.mxu0 0.0
    %42 = vmatpush.xpose.msra.mxu0 0.0
    %43 = vmatpush.xpose.msra.mxu0 0.0
    %44 = vmatpush.xpose.msra.mxu0 0.0
    %45 = vmatpush.xpose.msra.mxu0 0.0
    %46 = vmatpush.xpose.msra.mxu0 0.0
    %47 = vmatpush.xpose.msra.mxu0 %v29
    %48 = vmatmul.f32.gmra.mxu0 %v29
    %v49 = vpop.f32.mrf.mxu0
    %v50 = vadd.f32 0.0, %v49
    %51 = vdwg.mxu0
    %52 = vmatpush.xpose.msra.mxu0 0.0
    %53 = vmatpush.xpose.msra.mxu0 0.0
    %54 = vmatpush.xpose.msra.mxu0 0.0
    %55 = vmatpush.xpose.msra.mxu0 0.0
    %56 = vmatpush.xpose.msra.mxu0 0.0
    %57 = vmatpush.xpose.msra.mxu0 0.0
    %58 = vmatpush.xpose.msra.mxu0 0.0
    %59 = vmatpush.xpose.msra.mxu0 0.0
    %60 = vmatpush.xpose.msra.mxu0 0.0
    %61 = vmatpush.xpose.msra.mxu0 0.0
    %62 = vmatpush.xpose.msra.mxu0 0.0
    %63 = vmatpush.xpose.msra.mxu0 0.0
    %64 = vmatpush.xpose.msra.mxu0 0.0
    %65 = vmatpush.xpose.msra.mxu0 0.0
    %66 = vmatpush.xpose.msra.mxu0 0.0
    %67 = vmatpush.xpose.msra.mxu0 %v30
    %68 = vmatmul.f32.gmra.mxu0 %v30
    %v69 = vpop.f32.mrf.mxu0
    %v70 = vadd.f32 %v50, %v69
    %71 = vdwg.mxu0
    %v72 = vadd.f32 %v31, %v70
    %vm73 = vcmask 64512
    %74 = vst.msk [vmem:[#allocation2] sm:$0xff] %vm73, %v72
    // Predicated region
    $region14: #{tpu_custom_call.1} parent=1 // pred_check
      %p75 = pneg %p23
    $region15: #{tpu_custom_call.1} parent=1 // pred_check_branch
      %77 = sbr.rel (%p75) target = $region17
    $region16: #{tpu_custom_call.1} parent=1 // pred_region
      %v78 = vld [vmem:[#allocation2] sm:$0xff]
      %v79 = vmul.f32 %v78, 0.00048828125
      %80 = vst.msk [vmem:[#allocation6] sm:$0xff] %vm73, %v79
    $region17: #{tpu_custom_call.1} parent=1 // pred_fallthru
      _
    // Predicated region
    $region18: #{tpu_custom_call.1} parent=1 // pred_check
      _
    $region19: #{tpu_custom_call.1} parent=1 // pred_check_branch
      %82 = sbr.rel (0) target = $region21
    $region20: #{tpu_custom_call.1} parent=1 // pred_region
      %84 = vsyncadd [#allocation5], 0
      %s86 = sshll.u32 [#allocation6], 4
      %s87 = int_to_ptr.vmem [resolvable:$true] %s86
      %s88 = sshll.u32 %s1, 4
      %s89 = int_to_ptr.hbm [resolvable:$true] %s88
      %91 = dma.vmem_to_hbm [thread:$0]  %s87, 128, %s89, [#allocation5]
    $region21: #{tpu_custom_call.1} parent=1 // pred_fallthru
      _
    // Predicated region
    $region22: #{tpu_custom_call.1} parent=1 // pred_check
      _
    $region23: #{tpu_custom_call.1} parent=1 // pred_check_branch
      %93 = sbr.rel (0) target = $region25
    $region24: #{tpu_custom_call.1} parent=1 // pred_region
      %95 = dma.done [#allocation5], 128
    $region25: #{tpu_custom_call.1} parent=1 // pred_fallthru
      _
    %96 = vsyncpa [#allocation4], 1
    %97 = vsyncpa [#allocation5], 1

</llo_original>
